<compile_context>
chip_gen: v7x
topology: tpu7x:2x2x1
jax: 0.10.0
libtpu: 0.0.40
codegen_flags: <defaults>
</compile_context>

<pallas_src>
import functools

import jax
import jax.numpy as jnp
from jax.experimental import pallas as pl
from jax.experimental.pallas import tpu as pltpu


def _mish_kernel(x_ref, o_ref):
    x = x_ref[...].astype(jnp.float32)
    # mish(x) = x * tanh(softplus(x)) = x * (e^{2x} + 2 e^x) / (e^{2x} + 2 e^x + 2)
    # Clamp before exp so e^{2x} stays finite in f32; for |x| > 30 the ratio is
    # already 1 (x > 0) or ~0 (x < 0) to well below f32 precision.
    xc = jnp.clip(x, -30.0, 30.0)
    e = jnp.exp(xc)
    num = e * (e + 2.0)
    y = x * num * pl.reciprocal(num + 2.0, approx=False)
    o_ref[...] = y.astype(o_ref.dtype)


def _mish_2d(x2d, tile_rows):
    rows, cols = x2d.shape
    if rows <= tile_rows:
        block_rows = rows          # full dim -> always a legal block shape
    else:
        block_rows = tile_rows     # multiple of 8; partial edge block is OK
    grid = (pl.cdiv(rows, block_rows),)

    n = rows * cols
    nbytes = n * x2d.dtype.itemsize
    cost = pl.CostEstimate(flops=8 * n, transcendentals=2 * n,
                           bytes_accessed=2 * nbytes)

    return pl.pallas_call(
        _mish_kernel,
        out_shape=jax.ShapeDtypeStruct((rows, cols), x2d.dtype),
        grid_spec=pltpu.PrefetchScalarGridSpec(
            num_scalar_prefetch=0,
            grid=grid,
            in_specs=[pl.BlockSpec((block_rows, cols), lambda i: (i, 0))],
            out_specs=pl.BlockSpec((block_rows, cols), lambda i: (i, 0)),
        ),
        compiler_params=pltpu.CompilerParams(
            dimension_semantics=("parallel",),
            vmem_limit_bytes=32 << 20,
        ),
        cost_estimate=cost,
    )(x2d)


@functools.partial(jax.jit, static_argnames=("tile_rows",))
def mish(x, tile_rows=512):
    """Elementwise Mish; any shape/dtype, computed in a lane-dense 2D view."""
    orig_shape = x.shape
    n = x.size
    if n == 0:
        return x
    tile_rows = max(8, (int(tile_rows) // 8) * 8)

    # Widest lane count (multiple of 128) that divides numel -> the reshape is
    # a free bitcast and no pad / slice passes surround the memory-bound kernel.
    cols = None
    for c in (1024, 512, 256, 128):
        if n % c == 0:
            cols = c
            break

    if cols is not None:
        x2d = x.reshape(n // cols, cols)
        return _mish_2d(x2d, tile_rows).reshape(orig_shape)

    # Fallback for sizes not divisible by 128: pad (zeros map to mish(0)=0).
    cols = 128
    pad = (-n) % cols
    flat = jnp.pad(x.reshape(-1), (0, pad))
    out2d = _mish_2d(flat.reshape(-1, cols), tile_rows)
    return out2d.reshape(-1)[:n].reshape(orig_shape)


def _mish_ref(x):
    xf = x.astype(jnp.float32)
    sp = jnp.logaddexp(xf, 0.0)
    return (xf * jnp.tanh(sp)).astype(x.dtype)


if __name__ == "__main__":
    key = jax.random.PRNGKey(0)

    # NCHW, as used by the PyTorch module.
    x = jax.random.normal(key, (2, 4, 16, 16), dtype=jnp.float32) * 3.0
    out = jax.block_until_ready(mish(x))
    ref = _mish_ref(x)
    assert out.shape == x.shape and out.dtype == x.dtype
    assert jnp.allclose(out, ref, atol=1e-5, rtol=1e-5), "mismatch vs reference (f32)"

    # Odd size -> exercises the padding fallback path.
    x_odd = jax.random.normal(jax.random.PRNGKey(1), (3, 5, 7), dtype=jnp.float32)
    out_odd = jax.block_until_ready(mish(x_odd))
    assert jnp.allclose(out_odd, _mish_ref(x_odd), atol=1e-5, rtol=1e-5), \
        "mismatch vs reference (odd size)"

    print("KERNEL_OK")
</pallas_src>

<mosaic_0001>
module attributes {stable_mosaic.version = 11 : i64} {
  func.func @_mish_kernel(%arg0: i32, %arg1: memref<2x1024xf32, #tpu.memory_space<vmem>>, %arg2: memref<2x1024xf32, #tpu.memory_space<vmem>>) attributes {dimension_semantics = [#tpu.dimension_semantics<parallel>], iteration_bounds = array<i64: 1>, scalar_prefetch = 0 : i64, scratch_operands = 0 : i64, tpu.core_type = #tpu.core_type<tc>, window_params = [{transform_indices = @transform_0, window_bounds = array<i64: 2, 1024>}, {transform_indices = @transform_1, window_bounds = array<i64: 2, 1024>}]} {
    %c0 = arith.constant 0 : index
    %c0_0 = arith.constant 0 : index
    %0 = vector.load %arg1[%c0, %c0_0] : memref<2x1024xf32, #tpu.memory_space<vmem>>, vector<2x1024xf32>
    %cst = arith.constant -3.000000e+01 : f32
    %cst_1 = arith.constant 3.000000e+01 : f32
    %1 = vector.broadcast %cst : f32 to vector<2x1024xf32>
    %2 = arith.maximumf %1, %0 : vector<2x1024xf32>
    %3 = vector.broadcast %cst_1 : f32 to vector<2x1024xf32>
    %4 = arith.minimumf %3, %2 : vector<2x1024xf32>
    %5 = math.exp %4 : vector<2x1024xf32>
    %cst_2 = arith.constant 2.000000e+00 : f32
    %6 = vector.broadcast %cst_2 : f32 to vector<2x1024xf32>
    %7 = arith.addf %5, %6 : vector<2x1024xf32>
    %8 = arith.mulf %5, %7 : vector<2x1024xf32>
    %9 = arith.mulf %0, %8 : vector<2x1024xf32>
    %cst_3 = arith.constant 2.000000e+00 : f32
    %10 = vector.broadcast %cst_3 : f32 to vector<2x1024xf32>
    %11 = arith.addf %8, %10 : vector<2x1024xf32>
    %12 = tpu.reciprocal %11 : vector<2x1024xf32> -> vector<2x1024xf32>
    %13 = arith.mulf %9, %12 : vector<2x1024xf32>
    %c0_4 = arith.constant 0 : index
    %c0_5 = arith.constant 0 : index
    %14 = vector.load %arg2[%c0_4, %c0_5] : memref<2x1024xf32, #tpu.memory_space<vmem>>, vector<2x1024xf32>
    tpu.vector_store %arg2[%c0_4, %c0_5], %13 {strides = array<i32>} : memref<2x1024xf32, #tpu.memory_space<vmem>>, vector<2x1024xf32>,
    return
  }
  func.func @transform_0(%arg0: i32) -> (i32, i32) {
    %c0_i32 = arith.constant 0 : i32
    %c0_i32_0 = arith.constant 0 : i32
    return %arg0, %c0_i32 : i32, i32
  }
  func.func @transform_1(%arg0: i32) -> (i32, i32) {
    %c0_i32 = arith.constant 0 : i32
    %c0_i32_0 = arith.constant 0 : i32
    return %arg0, %c0_i32 : i32, i32
  }
}

</mosaic_0001>

<llo_original>
// kernel: mish.1
$region0: #{mish.1}
  #allocation0 [shape = 'u32[]', space=smem, size = 0x4, offset = 0x4, fixed_abs, tag = 'smem constant byte address 0x4 - core index']
  #allocation1 [shape = 'u32[144,128]{1,0:T(1,128)}', space=vmem, size = 0x12000, scoped, tag = 'internal scratch']
  %s0 = inlined_call_operand.vmem [shape: f32[2,1024], index: 0, kind: input, shape index: {}]
  %s1 = inlined_call_operand.vmem [shape: f32[2,1024], index: 1, kind: output, shape index: {}]
  %s2 = sld [smem:[#allocation0]]
  $region14: #{mish.1} parent=0
    _
  %s4 = ssub.s32 1, %s2
  %s5 = scalar_select 0, %s4, %s2
  // Predicated region
  $region2: #{mish.1} parent=0 // pred_check
    _
  $region3: #{mish.1} parent=0 // pred_check_branch
    %7 = sbr.rel (0) target = $region5
  $region4: #{mish.1} parent=0 // pred_region
    _
  $region5: #{mish.1} parent=0 // pred_fallthru
    _
  %v8 = vld [vmem:[%s0] sm:$0xff]
  %v9 = vld [vmem:[%s0 + $0x8] sm:$0xff]
  %v10 = vmax.f32 %v8, -30.0
  %v11 = vmax.f32 %v9, -30.0
  %v12 = vmin.f32 %v10, 30.0
  %v13 = vmin.f32 %v11, 30.0
  %v14 = vmul.f32 %v12, 1.442695
  %v15 = vpow.pop %v14
  %v16 = vmul.f32 %v13, 1.442695
  %v17 = vpow.pop %v16
  %v18 = vadd.f32 %v15, 2.0
  %v19 = vadd.f32 %v17, 2.0
  %v20 = vmul.f32 %v15, %v18
  %v21 = vmul.f32 %v17, %v19
  %v22 = vmul.f32 %v8, %v20
  %v23 = vmul.f32 %v9, %v21
  %v24 = vadd.f32 %v20, 2.0
  %v25 = vadd.f32 %v21, 2.0
  %v26 = vrcp.pop %v24
  %v27 = vrcp.pop %v25
  %v28 = vmul.f32 %v22, %v26
  %v29 = vmul.f32 %v23, %v27
  %30 = vst [vmem:[%s1] sm:$0xff] %v28
  %31 = vst [vmem:[%s1 + $0x8] sm:$0xff] %v29
  // Predicated region
  $region6: #{mish.1} parent=0 // pred_check
    _
  $region7: #{mish.1} parent=0 // pred_check_branch
    %33 = sbr.rel (0) target = $region9
  $region8: #{mish.1} parent=0 // pred_region
    _
  $region9: #{mish.1} parent=0 // pred_fallthru
    _
  // Predicated region
  $region10: #{mish.1} parent=0 // pred_check
    _
  $region11: #{mish.1} parent=0 // pred_check_branch
    %35 = sbr.rel (0) target = $region13
  $region12: #{mish.1} parent=0 // pred_region
    _
  $region13: #{mish.1} parent=0 // pred_fallthru
    _

</llo_original>
